<compile_context>
chip_gen: v7x
topology: tpu7x:2x2x1
jax: 0.10.0
libtpu: 0.0.40
codegen_flags: <defaults>
</compile_context>

<pallas_src>
import numpy as np
import jax
import jax.numpy as jnp
from jax import lax
from jax.experimental import pallas as pl
from jax.experimental.pallas import tpu as pltpu


_MAX_TILE_LANES = 16384   # cap on lane tile (bounds per-step DMA size & compile time)
_COMPUTE_LANES = 512      # inner compute chunk: keeps acc/idx resident in vregs
_STATIC_UNROLL_N = 32     # fully unroll the select chain below this N; fori above


def _vmem_capacity_bytes():
    try:
        return int(pltpu.get_tpu_info().vmem_capacity_bytes)
    except Exception:
        return 64 * 1024 * 1024   # v7x per-TC capacity: safe lower bound for all gens


def _pick_lane_tile(n_lanes, per_lane_bytes, force_split):
    """Budget-driven lane tile: as large as double-buffered VMEM allows."""
    if n_lanes <= 128:
        return n_lanes
    budget = int(_vmem_capacity_bytes() * 0.45)   # headroom for pipeline/scratch
    t = budget // max(per_lane_bytes, 1)
    t = min(t, n_lanes, _MAX_TILE_LANES)
    if force_split and n_lanes >= 256:
        t = min(t, n_lanes // 2)   # guarantee >= 2 grid steps so v7x megacore shards
    if t >= _COMPUTE_LANES:
        t = (t // _COMPUTE_LANES) * _COMPUTE_LANES
    else:
        t = max(128, (t // 128) * 128)
    return t
    # TODO(synk): for extremely large N (block (N,128) alone overflowing VMEM),
    # add an N grid axis with a running accumulator instead of a full-N block.


def _make_gather_kernel(N, K, lane_tile, idx_itemsize):
    """Kernel for out[k, m] = x[idx[k, m], m] on (N, lane_tile)/(K, lane_tile) blocks."""
    tc = lane_tile if lane_tile < _COMPUTE_LANES else _COMPUTE_LANES
    n_lane_chunks = -(-lane_tile // tc)
    # Output-row chunk: full 8-sublane (f32) / 16-sublane (int16) stores.
    k_sub = 8 if idx_itemsize >= 4 else 16
    kc_step = K if K <= k_sub else k_sub

    def kernel(x_ref, idx_ref, o_ref):
        out_dtype = o_ref.dtype
        for c in range(n_lane_chunks):
            c0 = c * tc
            cw = min(tc, lane_tile - c0)
            lane_ds = pl.ds(c0, cw)
            for k0 in range(0, K, kc_step):
                kw = min(kc_step, K - k0)
                idx = idx_ref[pl.ds(k0, kw), lane_ds].astype(jnp.int32)   # (kw, cw)
                acc0 = jnp.zeros((kw, cw), out_dtype)
                if N <= _STATIC_UNROLL_N:
                    acc = acc0
                    for n in range(N):
                        row = x_ref[pl.ds(n, 1), lane_ds]                 # (1, cw)
                        acc = jnp.where(idx == n, row, acc)
                else:
                    def body(n, a):
                        row = x_ref[pl.ds(n, 1), lane_ds]
                        return jnp.where(idx == n, row, a)
                    acc = lax.fori_loop(0, N, body, acc0, unroll=8)
                o_ref[pl.ds(k0, kw), lane_ds] = acc

    return kernel


def pallas_gather(x, y, dim):
    """Equivalent of torch.gather(x, dim, y): output shape y.shape, dtype x.dtype."""
    nd = x.ndim
    d = dim % nd
    N = int(x.shape[d])
    K = int(y.shape[d])
    x_item = np.dtype(x.dtype).itemsize

    batch_match = all(int(y.shape[i]) == int(x.shape[i]) for i in range(nd) if i != d)
    L_trail = int(np.prod(x.shape[d + 1:])) if d + 1 < nd else 1
    vmem_limit = int(_vmem_capacity_bytes() * 0.75)

    if d != nd - 1 and batch_match and L_trail >= 128:
        # ---------- zero-copy path: contiguous collapses only, no HBM copies ----------
        B = int(np.prod(x.shape[:d])) if d > 0 else 1
        L = L_trail
        x3 = x.reshape(B, N, L)
        y3 = y.reshape(B, K, L)
        if not (np.issubdtype(np.dtype(y3.dtype), np.integer)
                and np.dtype(y3.dtype).itemsize <= 4):
            y3 = y3.astype(jnp.int32)
        idx_item = np.dtype(y3.dtype).itemsize

        per_lane = 2 * (N * x_item + K * idx_item + K * x_item)   # double-buffered
        TL = _pick_lane_tile(L, per_lane, force_split=(B == 1))
        grid = (B, pl.cdiv(L, TL))

        out3 = pl.pallas_call(
            _make_gather_kernel(N, K, TL, idx_item),
            out_shape=jax.ShapeDtypeStruct((B, K, L), x.dtype),
            grid=grid,
            in_specs=[
                pl.BlockSpec((None, N, TL), lambda b, j: (b, 0, j)),
                pl.BlockSpec((None, K, TL), lambda b, j: (b, 0, j)),
            ],
            out_specs=pl.BlockSpec((None, K, TL), lambda b, j: (b, 0, j)),
            compiler_params=pltpu.CompilerParams(
                dimension_semantics=("parallel", "parallel"),
                vmem_limit_bytes=vmem_limit),
            cost_estimate=pl.CostEstimate(
                flops=2 * N * K * B * L,
                transcendentals=0,
                bytes_accessed=B * L * (N * x_item + K * (idx_item + x_item))),
        )(x3, y3)
        return out3.reshape(y.shape)

    # ---------- fused-M path (gather on last axis / mismatched batch extents) ----------
    xt = jnp.moveaxis(x, d, 0)                       # (N, *x_batch)
    yt = jnp.moveaxis(y, d, 0)                       # (K, *y_batch)
    # torch.gather allows index to be <= input on the non-gather dims.
    if xt.shape[1:] != yt.shape[1:]:
        xt = xt[(slice(None),) + tuple(slice(0, s) for s in yt.shape[1:])]
    lead = yt.shape[1:]
    M = int(np.prod(lead)) if lead else 1

    idx_dtype = jnp.int16 if N <= 32767 else jnp.int32   # halve idx HBM traffic
    x2 = xt.reshape(N, M)
    y2 = yt.reshape(K, M).astype(idx_dtype)
    idx_item = np.dtype(idx_dtype).itemsize

    per_lane = 2 * (N * x_item + K * idx_item + K * x_item)
    TM = _pick_lane_tile(M, per_lane, force_split=True)
    grid = (pl.cdiv(M, TM),)

    out2 = pl.pallas_call(
        _make_gather_kernel(N, K, TM, idx_item),
        out_shape=jax.ShapeDtypeStruct((K, M), x.dtype),
        grid=grid,
        in_specs=[
            pl.BlockSpec((N, TM), lambda i: (0, i)),
            pl.BlockSpec((K, TM), lambda i: (0, i)),
        ],
        out_specs=pl.BlockSpec((K, TM), lambda i: (0, i)),
        compiler_params=pltpu.CompilerParams(
            dimension_semantics=("parallel",),
            vmem_limit_bytes=vmem_limit),
        cost_estimate=pl.CostEstimate(
            flops=2 * N * K * M,
            transcendentals=0,
            bytes_accessed=M * (N * x_item + K * (idx_item + x_item))),
    )(x2, y2)
    out = out2.reshape((K,) + lead)
    return jnp.moveaxis(out, 0, d)


if __name__ == "__main__":
    key = jax.random.PRNGKey(0)
    kx, ky, kx2, ky2 = jax.random.split(key, 4)

    # TorchGather(dim=1): x (2,4,16,16) f32, y (2,4,16,16) with indices in [0,4).
    # Exercises the zero-copy (B, N, L) path.
    dim = 1
    x = jax.random.normal(kx, (2, 4, 16, 16), dtype=jnp.float32)
    y = jax.random.randint(ky, (2, 4, 16, 16), 0, 4, dtype=jnp.int32)
    out = pallas_gather(x, y, dim)
    jax.block_until_ready(out)
    ref = jnp.take_along_axis(x, y, axis=dim)
    np.testing.assert_array_equal(np.asarray(out), np.asarray(ref))

    # Gather along the last axis (N=16, K=8): exercises the fused-M path + int16 idx.
    dim2 = 3
    x2 = jax.random.normal(kx2, (2, 4, 16, 16), dtype=jnp.float32)
    y2 = jax.random.randint(ky2, (2, 4, 16, 8), 0, 16, dtype=jnp.int32)
    out2 = pallas_gather(x2, y2, dim2)
    jax.block_until_ready(out2)
    ref2 = jnp.take_along_axis(x2, y2, axis=dim2)
    np.testing.assert_array_equal(np.asarray(out2), np.asarray(ref2))

    print("KERNEL_OK")
</pallas_src>

<mosaic_0001>
module attributes {stable_mosaic.version = 11 : i64} {
  func.func @kernel(%arg0: i32, %arg1: i32, %arg2: memref<1x4x256xf32, #tpu.memory_space<vmem>>, %arg3: memref<1x4x256xi32, #tpu.memory_space<vmem>>, %arg4: memref<1x4x256xf32, #tpu.memory_space<vmem>>) attributes {dimension_semantics = [#tpu.dimension_semantics<parallel>, #tpu.dimension_semantics<parallel>], iteration_bounds = array<i64: 2, 1>, scalar_prefetch = 0 : i64, scratch_operands = 0 : i64, tpu.core_type = #tpu.core_type<tc>, window_params = [{transform_indices = @transform_0, window_bounds = array<i64: 1, 4, 256>}, {transform_indices = @transform_1, window_bounds = array<i64: 1, 4, 256>}, {transform_indices = @transform_2, window_bounds = array<i64: 1, 4, 256>}]} {
    %c0 = arith.constant 0 : index
    %c0_0 = arith.constant 0 : index
    %c0_1 = arith.constant 0 : index
    %0 = vector.load %arg3[%c0, %c0_0, %c0_1] : memref<1x4x256xi32, #tpu.memory_space<vmem>>, vector<1x4x256xi32>
    %1 = vector.shape_cast %0 : vector<1x4x256xi32> to vector<4x256xi32>
    %cst = arith.constant 0.000000e+00 : f32
    %2 = vector.broadcast %cst : f32 to vector<4x256xf32>
    %c0_2 = arith.constant 0 : index
    %c0_3 = arith.constant 0 : index
    %c0_4 = arith.constant 0 : index
    %3 = vector.load %arg2[%c0_2, %c0_3, %c0_4] : memref<1x4x256xf32, #tpu.memory_space<vmem>>, vector<1x1x256xf32>
    %4 = vector.shape_cast %3 : vector<1x1x256xf32> to vector<1x256xf32>
    %c0_i32 = arith.constant 0 : i32
    %5 = vector.broadcast %c0_i32 : i32 to vector<4x256xi32>
    %6 = arith.cmpi eq, %1, %5 : vector<4x256xi32>
    %7 = vector.shape_cast %4 : vector<1x256xf32> to vector<1x256xf32>
    %8 = vector.broadcast %7 : vector<1x256xf32> to vector<4x256xf32>
    %9 = arith.select %6, %8, %2 : vector<4x256xi1>, vector<4x256xf32>
    %c0_5 = arith.constant 0 : index
    %c1 = arith.constant 1 : index
    %c0_6 = arith.constant 0 : index
    %10 = vector.load %arg2[%c0_5, %c1, %c0_6] : memref<1x4x256xf32, #tpu.memory_space<vmem>>, vector<1x1x256xf32>
    %11 = vector.shape_cast %10 : vector<1x1x256xf32> to vector<1x256xf32>
    %c1_i32 = arith.constant 1 : i32
    %12 = vector.broadcast %c1_i32 : i32 to vector<4x256xi32>
    %13 = arith.cmpi eq, %1, %12 : vector<4x256xi32>
    %14 = vector.shape_cast %11 : vector<1x256xf32> to vector<1x256xf32>
    %15 = vector.broadcast %14 : vector<1x256xf32> to vector<4x256xf32>
    %16 = arith.select %13, %15, %9 : vector<4x256xi1>, vector<4x256xf32>
    %c0_7 = arith.constant 0 : index
    %c2 = arith.constant 2 : index
    %c0_8 = arith.constant 0 : index
    %17 = vector.load %arg2[%c0_7, %c2, %c0_8] : memref<1x4x256xf32, #tpu.memory_space<vmem>>, vector<1x1x256xf32>
    %18 = vector.shape_cast %17 : vector<1x1x256xf32> to vector<1x256xf32>
    %c2_i32 = arith.constant 2 : i32
    %19 = vector.broadcast %c2_i32 : i32 to vector<4x256xi32>
    %20 = arith.cmpi eq, %1, %19 : vector<4x256xi32>
    %21 = vector.shape_cast %18 : vector<1x256xf32> to vector<1x256xf32>
    %22 = vector.broadcast %21 : vector<1x256xf32> to vector<4x256xf32>
    %23 = arith.select %20, %22, %16 : vector<4x256xi1>, vector<4x256xf32>
    %c0_9 = arith.constant 0 : index
    %c3 = arith.constant 3 : index
    %c0_10 = arith.constant 0 : index
    %24 = vector.load %arg2[%c0_9, %c3, %c0_10] : memref<1x4x256xf32, #tpu.memory_space<vmem>>, vector<1x1x256xf32>
    %25 = vector.shape_cast %24 : vector<1x1x256xf32> to vector<1x256xf32>
    %c3_i32 = arith.constant 3 : i32
    %26 = vector.broadcast %c3_i32 : i32 to vector<4x256xi32>
    %27 = arith.cmpi eq, %1, %26 : vector<4x256xi32>
    %28 = vector.shape_cast %25 : vector<1x256xf32> to vector<1x256xf32>
    %29 = vector.broadcast %28 : vector<1x256xf32> to vector<4x256xf32>
    %30 = arith.select %27, %29, %23 : vector<4x256xi1>, vector<4x256xf32>
    %c0_11 = arith.constant 0 : index
    %c0_12 = arith.constant 0 : index
    %c0_13 = arith.constant 0 : index
    %31 = vector.load %arg4[%c0_11, %c0_12, %c0_13] : memref<1x4x256xf32, #tpu.memory_space<vmem>>, vector<1x4x256xf32>
    %32 = vector.shape_cast %31 : vector<1x4x256xf32> to vector<4x256xf32>
    %33 = vector.shape_cast %30 : vector<4x256xf32> to vector<1x4x256xf32>
    tpu.vector_store %arg4[%c0_11, %c0_12, %c0_13], %33 {strides = array<i32>} : memref<1x4x256xf32, #tpu.memory_space<vmem>>, vector<1x4x256xf32>,
    return
  }
  func.func @transform_0(%arg0: i32, %arg1: i32) -> (i32, i32, i32) {
    %c0_i32 = arith.constant 0 : i32
    %c0_i32_0 = arith.constant 0 : i32
    return %arg0, %c0_i32, %arg1 : i32, i32, i32
  }
  func.func @transform_1(%arg0: i32, %arg1: i32) -> (i32, i32, i32) {
    %c0_i32 = arith.constant 0 : i32
    %c0_i32_0 = arith.constant 0 : i32
    return %arg0, %c0_i32, %arg1 : i32, i32, i32
  }
  func.func @transform_2(%arg0: i32, %arg1: i32) -> (i32, i32, i32) {
    %c0_i32 = arith.constant 0 : i32
    %c0_i32_0 = arith.constant 0 : i32
    return %arg0, %c0_i32, %arg1 : i32, i32, i32
  }
}

</mosaic_0001>

<llo_original>
// kernel: tpu_custom_call.1
$region0: #{tpu_custom_call.1}
  #allocation0 [shape = 'u32[]', space=smem, size = 0x4, offset = 0x4, fixed_abs, tag = 'smem constant byte address 0x4 - core index']
  #allocation1 [shape = 'u32[144,128]{1,0:T(1,128)}', space=vmem, size = 0x12000, scoped, tag = 'internal scratch']
  %s0 = inlined_call_operand.hbm [shape: f32[2,4,256], index: 0, kind: input, shape index: {}]
  %s1 = inlined_call_operand.hbm [shape: s32[2,4,256], index: 1, kind: input, shape index: {}]
  %s2 = inlined_call_operand.hbm [shape: f32[2,4,256], index: 2, kind: output, shape index: {}]
  %s3 = sld [smem:[#allocation0]]
  $region49: #{tpu_custom_call.1} parent=0
    _
  %s5 = ssub.s32 1, %s3
  %s6 = scalar_select 0, %s5, %s3
  $region1: #{tpu_custom_call.1} parent=0
    #allocation2 [shape = 'u8[8192]{0}', space=vmem, size = 0x2000, scoped, tag = 'input window, operand 0']
    #allocation3 [shape = 's32[2]{0}', space=sflag, size = 0x8, scoped, tag = 'scoped memory for tpu_custom_call.1']
    #allocation4 [shape = 's32[2]{0}', space=sflag, size = 0x8, scoped, tag = 'scoped memory for tpu_custom_call.1']
    #allocation5 [shape = 'u8[8192]{0}', space=vmem, size = 0x2000, scoped, tag = 'input window, operand 1']
    #allocation6 [shape = 's32[2]{0}', space=sflag, size = 0x8, scoped, tag = 'scoped memory for tpu_custom_call.1']
    #allocation7 [shape = 'u8[8192]{0}', space=vmem, size = 0x2000, scoped, tag = 'output window, operand 0']
    %7 = vsyncpa [#allocation3], 0
    %s8 = scalar_lea.sflag [#allocation3], 1
    %9 = vsyncpa %s8, 0
    %10 = vsyncpa [#allocation6], 0
    %s11 = scalar_lea.sflag [#allocation6], 1
    %12 = vsyncpa %s11, 0
    %13 = vsyncpa [#allocation4], 0
    %s14 = scalar_lea.sflag [#allocation4], 1
    %15 = vsyncpa %s14, 0
    loop: start=0, step=1, limit=4
    $region2: #{tpu_custom_call.1} parent=1 // loop_pre_header
      _
    $region3: #{tpu_custom_call.1} parent=1 // loop_header
      %s17 = sphi 0, %s21
      %p18 = scmp.ge.s32.totalorder %s17, 4
      %s24 = sphi 0, %s36
      %s25 = sphi 0, %s32
      %s26 = sphi 0, %s24
      %s27 = sphi 0, %s25
      %s28 = sphi 0, %s26
      %s29 = sphi 0, %s27
      %s41 = sphi 0, %s43
      %s44 = sphi 0, %s41
      %s45 = sphi 0, %s44
      %s61 = sphi 0, %s45
      %s69 = sphi 0, %s71
      %s72 = sphi 0, %s69
      %s73 = sphi 0, %s72
      %s89 = sphi 0, %s73
      %s97 = sphi 0, %s99
      %s100 = sphi 0, %s97
      %s101 = sphi 0, %s100
      %s117 = sphi 0, %s101
    $region4: #{tpu_custom_call.1} parent=1 // loop_header_branch
      %20 = sbr.rel (%p18) target = $region8
    $region5: #{tpu_custom_call.1} parent=1 // loop_body
      %s22 = ssub.s32 %s17, 1
      %s23 = ssub.s32 %s17, 2
      %s30 = sadd.s32 1, %s25
      %p31 = scmp.ge.s32.totalorder %s30, 1
      %s32 = scalar_select %p31, 0, %s30
      %s33 = sadd.s32 1, %s24
      %s34 = scalar_select %p31, %s33, %s24
      %p35 = scmp.ge.s32.totalorder %s34, 2
      %s36 = scalar_select %p35, 0, %s34
      %s37 = ssub.s32 %s24, %s36
      %s38 = ssub.s32 %s25, %s32
      %s39 = sor.u32 %s37, %s38
      %p40 = scmp.eq.s32.totalorder %s39, 0
      %s42 = sadd.s32 %s41, 1
      %s43 = scalar_select %p40, %s41, %s42
      %p46 = pneg %p40
      %p47 = scmp.eq.s32.totalorder %s17, 1
      %p48 = por %p46, %p47
      %p49 = scmp.ne.s32.totalorder %s41, %s44
      %p50 = scmp.eq.s32.totalorder %s17, 0
      %p51 = por %p49, %p50
      %p52 = scmp.ne.s32.totalorder %s41, %s44
      %p53 = scmp.eq.s32.totalorder %s22, 1
      %p54 = por %p52, %p53
      %p55 = scmp.ne.s32.totalorder %s44, %s45
      %p56 = scmp.eq.s32.totalorder %s22, 0
      %p57 = por %p55, %p56
      %p58 = scmp.ne.s32.totalorder %s44, %s45
      %p59 = scmp.eq.s32.totalorder %s23, 1
      %p60 = por %p58, %p59
      %p62 = scmp.ne.s32.totalorder %s45, %s61
      %p63 = scmp.eq.s32.totalorder %s23, 0
      %p64 = por %p62, %p63
      %s65 = ssub.s32 %s24, %s36
      %s66 = ssub.s32 %s25, %s32
      %s67 = sor.u32 %s65, %s66
      %p68 = scmp.eq.s32.totalorder %s67, 0
      %s70 = sadd.s32 %s69, 1
      %s71 = scalar_select %p68, %s69, %s70
      %p74 = pneg %p68
      %p75 = scmp.eq.s32.totalorder %s17, 1
      %p76 = por %p74, %p75
      %p77 = scmp.ne.s32.totalorder %s69, %s72
      %p78 = scmp.eq.s32.totalorder %s17, 0
      %p79 = por %p77, %p78
      %p80 = scmp.ne.s32.totalorder %s69, %s72
      %p81 = scmp.eq.s32.totalorder %s22, 1
      %p82 = por %p80, %p81
      %p83 = scmp.ne.s32.totalorder %s72, %s73
      %p84 = scmp.eq.s32.totalorder %s22, 0
      %p85 = por %p83, %p84
      %p86 = scmp.ne.s32.totalorder %s72, %s73
      %p87 = scmp.eq.s32.totalorder %s23, 1
      %p88 = por %p86, %p87
      %p90 = scmp.ne.s32.totalorder %s73, %s89
      %p91 = scmp.eq.s32.totalorder %s23, 0
      %p92 = por %p90, %p91
      %s93 = ssub.s32 %s24, %s36
      %s94 = ssub.s32 %s25, %s32
      %s95 = sor.u32 %s93, %s94
      %p96 = scmp.eq.s32.totalorder %s95, 0
      %s98 = sadd.s32 %s97, 1
      %s99 = scalar_select %p96, %s97, %s98
      %p102 = pneg %p96
      %p103 = scmp.eq.s32.totalorder %s17, 1
      %p104 = por %p102, %p103
      %p105 = scmp.ne.s32.totalorder %s97, %s100
      %p106 = scmp.eq.s32.totalorder %s17, 0
      %p107 = por %p105, %p106
      %p108 = scmp.ne.s32.totalorder %s97, %s100
      %p109 = scmp.eq.s32.totalorder %s22, 1
      %p110 = por %p108, %p109
      %p111 = scmp.ne.s32.totalorder %s100, %s101
      %p112 = scmp.eq.s32.totalorder %s22, 0
      %p113 = por %p111, %p112
      %p114 = scmp.ne.s32.totalorder %s100, %s101
      %p115 = scmp.eq.s32.totalorder %s23, 1
      %p116 = por %p114, %p115
      %p118 = scmp.ne.s32.totalorder %s101, %s117
      %p119 = scmp.eq.s32.totalorder %s23, 0
      %p120 = por %p118, %p119
      %p121 = scmp.le.s32.totalorder 1, %s17
      %p122 = scmp.lt.s32.totalorder %s17, 3
      %p123 = pnand %p121, %p122
      %p124 = pneg %p123
      // Predicated region
      $region9: #{tpu_custom_call.1} parent=5 // pred_check
        _
      $region10: #{tpu_custom_call.1} parent=5 // pred_check_branch
        %126 = sbr.rel (%p123) target = $region12
      $region11: #{tpu_custom_call.1} parent=5 // pred_region
        %s127 = ssub.s32 %s17, 1
      $region12: #{tpu_custom_call.1} parent=5 // pred_fallthru
        _
      %p128 = scmp.lt.s32.totalorder %s17, 2
      // Predicated region
      $region13: #{tpu_custom_call.1} parent=5 // pred_check
        %p129 = pneg %p128
      $region14: #{tpu_custom_call.1} parent=5 // pred_check_branch
        %131 = sbr.rel (%p129) target = $region16
      $region15: #{tpu_custom_call.1} parent=5 // pred_region
        // Predicated region
        $region17: #{tpu_custom_call.1} parent=15 // pred_check
          %p132 = pneg %p51
        $region18: #{tpu_custom_call.1} parent=15 // pred_check_branch
          %134 = sbr.rel (%p132) target = $region20
        $region19: #{tpu_custom_call.1} parent=15 // pred_region
          %s135 = sand.u32 %s41, 1
          %s136 = scalar_lea.sflag [#allocation3], %s135
          %s137 = sand.u32 %s41, 1
          %s138 = smul.addr %s137, 8
          %s139 = scalar_lea.vmem [#allocation2], %s138
          %s140 = smul.u32 2, %s25
          %s142 = ssub.s32 128, 128
          %143 = vsyncadd %s136, %s142
          %s144 = smul.addr %s24, 2
          %s145 = sadd.s32 %s140, %s144
          %s146 = smul.addr %s145, 64
          %s147 = scalar_lea.hbm %s0, %s146
          %s149 = sshll.u32 %s139, 4
          %s150 = int_to_ptr.vmem [resolvable:$true] %s149
          %152 = dma.hbm_to_vmem [thread:$0]  %s147, 128, %s150, %s136
        $region20: #{tpu_custom_call.1} parent=15 // pred_fallthru
          _
        // Predicated region
        $region21: #{tpu_custom_call.1} parent=15 // pred_check
          %p153 = pneg %p79
        $region22: #{tpu_custom_call.1} parent=15 // pred_check_branch
          %155 = sbr.rel (%p153) target = $region24
        $region23: #{tpu_custom_call.1} parent=15 // pred_region
          %s156 = sand.u32 %s69, 1
          %s157 = scalar_lea.sflag [#allocation6], %s156
          %s158 = sand.u32 %s69, 1
          %s159 = smul.addr %s158, 8
          %s160 = scalar_lea.vmem [#allocation5], %s159
          %s161 = smul.u32 2, %s25
          %s163 = ssub.s32 128, 128
          %164 = vsyncadd %s157, %s163
          %s165 = smul.addr %s24, 2
          %s166 = sadd.s32 %s161, %s165
          %s167 = smul.addr %s166, 64
          %s168 = scalar_lea.hbm %s1, %s167
          %s170 = sshll.u32 %s160, 4
          %s171 = int_to_ptr.vmem [resolvable:$true] %s170
          %173 = dma.hbm_to_vmem [thread:$0]  %s168, 128, %s171, %s157
        $region24: #{tpu_custom_call.1} parent=15 // pred_fallthru
          _
      $region16: #{tpu_custom_call.1} parent=5 // pred_fallthru
        _
      %p174 = scmp.le.s32.totalorder 1, %s17
      %p175 = scmp.lt.s32.totalorder %s17, 3
      %p176 = pnand %p174, %p175
      %p177 = pneg %p176
      // Predicated region
      $region25: #{tpu_custom_call.1} parent=5 // pred_check
        _
      $region26: #{tpu_custom_call.1} parent=5 // pred_check_branch
        %179 = sbr.rel (%p176) target = $region28
      $region27: #{tpu_custom_call.1} parent=5 // pred_region
        %s180 = ssub.s32 %s17, 1
        %s181 = sand.u32 %s44, 1
        %s182 = scalar_lea.sflag [#allocation3], %s181
        %s183 = sand.u32 %s44, 1
        %s184 = smul.addr %s183, 8
        %s185 = scalar_lea.vmem [#allocation2], %s184
        // Predicated region
        $region29: #{tpu_custom_call.1} parent=27 // pred_check
          %p186 = pneg %p57
        $region30: #{tpu_custom_call.1} parent=27 // pred_check_branch
          %188 = sbr.rel (%p186) target = $region32
        $region31: #{tpu_custom_call.1} parent=27 // pred_region
          %189 = dma.done %s182, 128
        $region32: #{tpu_custom_call.1} parent=27 // pred_fallthru
          _
        %s190 = sand.u32 %s72, 1
        %s191 = scalar_lea.sflag [#allocation6], %s190
        %s192 = sand.u32 %s72, 1
        %s193 = smul.addr %s192, 8
        %s194 = scalar_lea.vmem [#allocation5], %s193
        // Predicated region
        $region33: #{tpu_custom_call.1} parent=27 // pred_check
          %p195 = pneg %p85
        $region34: #{tpu_custom_call.1} parent=27 // pred_check_branch
          %197 = sbr.rel (%p195) target = $region36
        $region35: #{tpu_custom_call.1} parent=27 // pred_region
          %198 = dma.done %s191, 128
        $region36: #{tpu_custom_call.1} parent=27 // pred_fallthru
          _
        %s199 = sand.u32 %s44, 1
        %s200 = scalar_lea.sflag [#allocation3], %s199
        %s201 = sand.u32 %s44, 1
        %s202 = smul.addr %s201, 8
        %s203 = scalar_lea.vmem [#allocation2], %s202
        %p204 = pneg %p57
        %p205 = pneg %p54
        %s206 = sand.u32 %s72, 1
        %s207 = scalar_lea.sflag [#allocation6], %s206
        %s208 = sand.u32 %s72, 1
        %s209 = smul.addr %s208, 8
        %s210 = scalar_lea.vmem [#allocation5], %s209
        %p211 = pneg %p85
        %p212 = pneg %p82
        %p213 = pneg %p113
        %p214 = pneg %p110
        %s215 = sand.u32 %s100, 1
        %s216 = scalar_lea.sflag [#allocation4], %s215
        %s217 = sand.u32 %s100, 1
        %s218 = smul.addr %s217, 8
        %s219 = scalar_lea.vmem [#allocation7], %s218
        %s220 = smul.u32 2, %s27
        %s221 = smul.u32 2, %s27
        %s222 = smul.u32 2, %s27
        %v223 = vld [vmem:[%s194] sm:$0xff]
        %v224 = vld [vmem:[%s185] ss:$4 sm:$0x3]
        %vm225 = vcmp.eq.s32.totalorder %v223, 0
        %v227 = vlaneseq
        %v228 = vshrl.u32 %v227, 7
        %v229 = vsub.s32 0, %v228
        %v230 = vrot.slane %v224, %v229
        %v231 = vlaneseq
        %v232 = vshrl.u32 %v231, 7
        %v233 = vsub.s32 1, %v232
        %v234 = vrot.slane %v224, %v233
        %v235 = vcombine.low %v230, %v234
        %v237 = vsel %vm225, %v235, 0.0
        %s238 = scalar_lea.vmem %s185, 1 [#allocation2]
        %v239 = vld [vmem:[%s238] ss:$4 sm:$0x3]
        %vm240 = vcmp.eq.s32.totalorder %v223, 1
        %v242 = vlaneseq
        %v243 = vshrl.u32 %v242, 7
        %v244 = vsub.s32 0, %v243
        %v245 = vrot.slane %v239, %v244
        %v246 = vlaneseq
        %v247 = vshrl.u32 %v246, 7
        %v248 = vsub.s32 1, %v247
        %v249 = vrot.slane %v239, %v248
        %v250 = vcombine.low %v245, %v249
        %v252 = vsel %vm240, %v250, %v237
        %s253 = scalar_lea.vmem %s185, 2 [#allocation2]
        %v254 = vld [vmem:[%s253] ss:$4 sm:$0x3]
        %vm255 = vcmp.eq.s32.totalorder %v223, 2
        %v257 = vlaneseq
        %v258 = vshrl.u32 %v257, 7
        %v259 = vsub.s32 0, %v258
        %v260 = vrot.slane %v254, %v259
        %v261 = vlaneseq
        %v262 = vshrl.u32 %v261, 7
        %v263 = vsub.s32 1, %v262
        %v264 = vrot.slane %v254, %v263
        %v265 = vcombine.low %v260, %v264
        %v267 = vsel %vm255, %v265, %v252
        %s268 = scalar_lea.vmem %s185, 3 [#allocation2]
        %v269 = vld [vmem:[%s268] ss:$4 sm:$0x3]
        %vm270 = vcmp.eq.s32.totalorder %v223, 3
        %v272 = vlaneseq
        %v273 = vshrl.u32 %v272, 7
        %v274 = vsub.s32 0, %v273
        %v275 = vrot.slane %v269, %v274
        %v276 = vlaneseq
        %v277 = vshrl.u32 %v276, 7
        %v278 = vsub.s32 1, %v277
        %v279 = vrot.slane %v269, %v278
        %v280 = vcombine.low %v275, %v279
        %v282 = vsel %vm270, %v280, %v267
        %283 = vst [vmem:[%s219] sm:$0xff] %v282
        %s284 = sand.u32 %s100, 1
        %s285 = scalar_lea.sflag [#allocation4], %s284
        %s286 = sand.u32 %s100, 1
        %s287 = smul.addr %s286, 8
        %s288 = scalar_lea.vmem [#allocation7], %s287
        // Predicated region
        $region37: #{tpu_custom_call.1} parent=27 // pred_check
          %p289 = pneg %p110
        $region38: #{tpu_custom_call.1} parent=27 // pred_check_branch
          %291 = sbr.rel (%p289) target = $region40
        $region39: #{tpu_custom_call.1} parent=27 // pred_region
          %s292 = smul.u32 2, %s27
          %s294 = ssub.s32 128, 128
          %295 = vsyncadd %s285, %s294
          %s296 = smul.addr %s26, 2
          %s297 = sadd.s32 %s292, %s296
          %s298 = smul.addr %s297, 64
          %s299 = scalar_lea.hbm %s2, %s298
          %s301 = sshll.u32 %s288, 4
          %s302 = int_to_ptr.vmem [resolvable:$true] %s301
          %304 = dma.vmem_to_hbm [thread:$0]  %s302, 128, %s299, %s285
        $region40: #{tpu_custom_call.1} parent=27 // pred_fallthru
          _
      $region28: #{tpu_custom_call.1} parent=5 // pred_fallthru
        _
      %p305 = scmp.le.s32.totalorder 2, %s17
      // Predicated region
      $region41: #{tpu_custom_call.1} parent=5 // pred_check
        %p306 = pneg %p305
      $region42: #{tpu_custom_call.1} parent=5 // pred_check_branch
        %308 = sbr.rel (%p306) target = $region44
      $region43: #{tpu_custom_call.1} parent=5 // pred_region
        %s309 = ssub.s32 %s17, 2
        // Predicated region
        $region45: #{tpu_custom_call.1} parent=43 // pred_check
          %p310 = pneg %p116
        $region46: #{tpu_custom_call.1} parent=43 // pred_check_branch
          %312 = sbr.rel (%p310) target = $region48
        $region47: #{tpu_custom_call.1} parent=43 // pred_region
          %s313 = sand.u32 %s101, 1
          %s314 = scalar_lea.sflag [#allocation4], %s313
          %s315 = sand.u32 %s101, 1
          %s316 = smul.addr %s315, 8
          %s317 = scalar_lea.vmem [#allocation7], %s316
          %318 = dma.done %s314, 128
        $region48: #{tpu_custom_call.1} parent=43 // pred_fallthru
          _
      $region44: #{tpu_custom_call.1} parent=5 // pred_fallthru
        _
    $region6: #{tpu_custom_call.1} parent=1 // loop_footer
      %s21 = sadd.s32 1, %s17
    $region7: #{tpu_custom_call.1} parent=1 // loop_footer_branch
      %16 = sbr.rel target = $region3
    $region8: #{tpu_custom_call.1} parent=1 // loop_exit
      _
    %319 = vsyncpa [#allocation3], 1
    %s320 = scalar_lea.sflag [#allocation3], 1
    %321 = vsyncpa %s320, 1
    %322 = vsyncpa [#allocation6], 1
    %s323 = scalar_lea.sflag [#allocation6], 1
    %324 = vsyncpa %s323, 1
    %325 = vsyncpa [#allocation4], 1
    %s326 = scalar_lea.sflag [#allocation4], 1
    %327 = vsyncpa %s326, 1

</llo_original>
